<compile_context>
chip_gen: v7x
topology: tpu7x:2x2x1
jax: 0.10.0
libtpu: 0.0.40
codegen_flags: <defaults>
</compile_context>

<pallas_src>
import jax
import jax.numpy as jnp
from jax.experimental import pallas as pl
from jax.experimental.pallas import tpu as pltpu


def _linear_kernel(x_ref, w_ref, b_ref, o_ref):
    # x_ref: (TB, D) VMEM tile of activations
    # w_ref: (D, 2)  VMEM resident weight (pre-transposed, native MXU RHS)
    # b_ref: (1, 2)  SMEM bias scalars
    # o_ref: (TB, 2) VMEM output tile
    acc = jax.lax.dot_general(
        x_ref[...], w_ref[...],
        dimension_numbers=(((1,), (0,)), ((), ())),   # (TB, D) @ (D, 2)
        preferred_element_type=jnp.float32,
    )  # (TB, 2) f32
    # Build the (TB, 2) bias from the two SMEM scalars (no VMEM bias block/DMA).
    col = jax.lax.broadcasted_iota(jnp.int32, acc.shape, 1)
    bias = jnp.where(col == 0, b_ref[0, 0], b_ref[0, 1])
    o_ref[...] = (acc + bias).astype(o_ref.dtype)


def _round_up(n, m):
    return ((n + m - 1) // m) * m


def binary_classifier_forward(x, weight, bias, *, max_block_rows=1024):
    """x: (B, C, H, W) float32; weight: (2, D); bias: (2,), with D = C*H*W."""
    B = x.shape[0]
    x2d = x.reshape(B, -1)                     # == x.view(x.size(0), -1) (row-major)
    D = x2d.shape[1]
    itemsize = x2d.dtype.itemsize

    # Batch tile: multiple of 8 (f32 sublanes).  Cap so the two pipeline buffers
    # of the x tile (2 * TB * D * itemsize) stay <= ~12 MiB — under v5e's 16 MiB
    # scoped-VMEM default and well inside v6e/v7x budgets.
    vmem_budget_for_x = 12 * 1024 * 1024
    cap = max(8, (vmem_budget_for_x // (2 * D * itemsize)) // 8 * 8)
    tb = min(max_block_rows, cap, _round_up(B, 8))
    tb = max(8, (tb // 8) * 8)

    # Ensure >= 2 grid steps when the batch allows it, so a "parallel" batch axis
    # actually engages both TensorCores on v7x.
    if B > 8 and pl.cdiv(B, tb) < 2:
        tb = max(8, _round_up(pl.cdiv(B, 2), 8))

    grid = (pl.cdiv(B, tb),)                   # ragged final block handled by Pallas

    w_t = jnp.transpose(weight).astype(jnp.float32)      # one-time (D, 2) transpose
    bias2d = bias.reshape(1, 2).astype(jnp.float32)

    out = pl.pallas_call(
        _linear_kernel,
        out_shape=jax.ShapeDtypeStruct((B, 2), x.dtype),
        grid=grid,
        in_specs=[
            pl.BlockSpec((tb, D), lambda i: (i, 0)),               # pipelined x tiles
            pl.BlockSpec((D, 2), lambda i: (0, 0)),                # resident weight (K, N)
            pl.BlockSpec(memory_space=pltpu.MemorySpace.SMEM),     # bias scalars in SMEM
        ],
        out_specs=pl.BlockSpec((tb, 2), lambda i: (i, 0)),
        compiler_params=pltpu.CompilerParams(
            dimension_semantics=("parallel",),                     # shard batch across TCs
            vmem_limit_bytes=32 * 1024 * 1024,
        ),
    )(x2d, w_t, bias2d)
    return out


if __name__ == "__main__":
    key = jax.random.PRNGKey(0)
    kx, kw, kb = jax.random.split(key, 3)

    # Small shapes consistent with the module: NCHW input (2, 4, 16, 16)
    B, C, H, W = 2, 4, 16, 16
    input_size = C * H * W  # 1024

    x = jax.random.normal(kx, (B, C, H, W), dtype=jnp.float32)

    # Deterministic parameter init (PyTorch-style uniform bound 1/sqrt(fan_in))
    bound = 1.0 / (input_size ** 0.5)
    weight = jax.random.uniform(kw, (2, input_size), jnp.float32, -bound, bound)
    bias = jax.random.uniform(kb, (2,), jnp.float32, -bound, bound)

    y = binary_classifier_forward(x, weight, bias)
    y = jax.block_until_ready(y)

    # Reference check in plain JAX
    y_ref = x.reshape(B, -1) @ weight.T + bias
    assert y.shape == (B, 2)
    assert jnp.allclose(y, y_ref, atol=1e-4, rtol=1e-4)

    print("KERNEL_OK")
</pallas_src>

<mosaic_0001>
module attributes {stable_mosaic.version = 11 : i64} {
  func.func @_linear_kernel(%arg0: i32, %arg1: memref<8x1024xf32, #tpu.memory_space<vmem>>, %arg2: memref<1024x2xf32, #tpu.memory_space<vmem>>, %arg3: memref<1x2xf32, #tpu.memory_space<smem>>, %arg4: memref<8x2xf32, #tpu.memory_space<vmem>>) attributes {dimension_semantics = [#tpu.dimension_semantics<parallel>], iteration_bounds = array<i64: 1>, scalar_prefetch = 0 : i64, scratch_operands = 0 : i64, tpu.core_type = #tpu.core_type<tc>, window_params = [{transform_indices = @transform_0, window_bounds = array<i64: 8, 1024>}, {pipeline_mode = #tpu.pipeline_mode<synchronous>, transform_indices = @transform_1, window_bounds = array<i64: 1024, 2>}, {transform_indices = @transform_2, window_bounds = array<i64: 1, 2>}, {transform_indices = @transform_3, window_bounds = array<i64: 8, 2>}]} {
    %c0 = arith.constant 0 : index
    %c0_0 = arith.constant 0 : index
    %0 = vector.load %arg1[%c0, %c0_0] : memref<8x1024xf32, #tpu.memory_space<vmem>>, vector<8x1024xf32>
    %c0_1 = arith.constant 0 : index
    %c0_2 = arith.constant 0 : index
    %1 = vector.load %arg2[%c0_1, %c0_2] : memref<1024x2xf32, #tpu.memory_space<vmem>>, vector<1024x2xf32>
    %cst = arith.constant dense<0.000000e+00> : vector<8x2xf32>
    %2 = tpu.matmul %0, %1, %cst {dimension_numbers = #tpu.dot_dimension_numbers<[1], [0], [0], [1], [0, 0, 1, 1], [], []>} : vector<8x1024xf32>, vector<1024x2xf32>, vector<8x2xf32> -> vector<8x2xf32>
    %3 = tpu.iota {dimensions = array<i32: 1>} : vector<8x2xi32>
    %c0_i32 = arith.constant 0 : i32
    %4 = vector.broadcast %c0_i32 : i32 to vector<8x2xi32>
    %5 = arith.cmpi eq, %3, %4 : vector<8x2xi32>
    %c0_3 = arith.constant 0 : index
    %c0_4 = arith.constant 0 : index
    %6 = memref.load %arg3[%c0_3, %c0_4] : memref<1x2xf32, #tpu.memory_space<smem>>
    %c0_5 = arith.constant 0 : index
    %c1 = arith.constant 1 : index
    %7 = memref.load %arg3[%c0_5, %c1] : memref<1x2xf32, #tpu.memory_space<smem>>
    %8 = vector.broadcast %6 : f32 to vector<8x2xf32>
    %9 = vector.broadcast %7 : f32 to vector<8x2xf32>
    %10 = arith.select %5, %8, %9 : vector<8x2xi1>, vector<8x2xf32>
    %11 = arith.addf %2, %10 : vector<8x2xf32>
    %c0_6 = arith.constant 0 : index
    %c0_7 = arith.constant 0 : index
    %12 = vector.load %arg4[%c0_6, %c0_7] : memref<8x2xf32, #tpu.memory_space<vmem>>, vector<8x2xf32>
    tpu.vector_store %arg4[%c0_6, %c0_7], %11 {strides = array<i32>} : memref<8x2xf32, #tpu.memory_space<vmem>>, vector<8x2xf32>,
    return
  }
  func.func @transform_0(%arg0: i32) -> (i32, i32) {
    %c0_i32 = arith.constant 0 : i32
    %c0_i32_0 = arith.constant 0 : i32
    return %arg0, %c0_i32 : i32, i32
  }
  func.func @transform_1(%arg0: i32) -> (i32, i32) {
    %c0_i32 = arith.constant 0 : i32
    %c0_i32_0 = arith.constant 0 : i32
    %c0_i32_1 = arith.constant 0 : i32
    return %c0_i32, %c0_i32_0 : i32, i32
  }
  func.func @transform_2(%arg0: i32) -> (i32, i32) {
    %c0_i32 = arith.constant 0 : i32
    %c0_i32_0 = arith.constant 0 : i32
    %c0_i32_1 = arith.constant 0 : i32
    return %c0_i32, %c0_i32_0 : i32, i32
  }
  func.func @transform_3(%arg0: i32) -> (i32, i32) {
    %c0_i32 = arith.constant 0 : i32
    %c0_i32_0 = arith.constant 0 : i32
    return %arg0, %c0_i32 : i32, i32
  }
}

</mosaic_0001>

<llo_original>
// kernel: tpu_custom_call.1
$region0: #{tpu_custom_call.1}
  #allocation0 [shape = 'u32[]', space=smem, size = 0x4, offset = 0x4, fixed_abs, tag = 'smem constant byte address 0x4 - core index']
  #allocation1 [shape = 'u32[144,128]{1,0:T(1,128)}', space=vmem, size = 0x12000, scoped, tag = 'internal scratch']
  %s0 = inlined_call_operand.vmem [shape: f32[2,1024], index: 0, kind: input, shape index: {}]
  %s1 = inlined_call_operand.vmem [shape: f32[1024,2], index: 1, kind: input, shape index: {}]
  %s2 = inlined_call_operand.vmem [shape: f32[1,2], index: 2, kind: input, shape index: {}]
  %s3 = inlined_call_operand.hbm [shape: f32[2,2], index: 3, kind: output, shape index: {}]
  %s4 = sld [smem:[#allocation0]]
  $region26: #{tpu_custom_call.1} parent=0
    _
  %s6 = ssub.s32 1, %s4
  %s7 = scalar_select 0, %s6, %s4
  $region1: #{tpu_custom_call.1} parent=0
    #allocation2 [shape = 'u8[512]{0}', space=smem, size = 0x200, scoped, tag = 'input window, operand 2, single buffered']
    #allocation3 [shape = 's32[1]{0}', space=sflag, size = 0x4, scoped, tag = 'scoped memory for tpu_custom_call.1']
    #allocation4 [shape = 's32[1]{0}', space=sflag, size = 0x4, scoped, tag = 'scoped memory for tpu_custom_call.1']
    #allocation5 [shape = 'u8[4096]{0}', space=vmem, size = 0x1000, scoped, tag = 'output window, operand 0, single buffered']
    %8 = vsyncpa [#allocation4], 0
    %9 = vsyncpa [#allocation3], 0
    // Predicated region
    $region2: #{tpu_custom_call.1} parent=1 // pred_check
      _
    $region3: #{tpu_custom_call.1} parent=1 // pred_check_branch
      %11 = sbr.rel (0) target = $region5
    $region4: #{tpu_custom_call.1} parent=1 // pred_region
      _
    $region5: #{tpu_custom_call.1} parent=1 // pred_fallthru
      _
    // Predicated region
    $region6: #{tpu_custom_call.1} parent=1 // pred_check
      _
    $region7: #{tpu_custom_call.1} parent=1 // pred_check_branch
      %13 = sbr.rel (0) target = $region9
    $region8: #{tpu_custom_call.1} parent=1 // pred_region
      _
    $region9: #{tpu_custom_call.1} parent=1 // pred_fallthru
      _
    // Predicated region
    $region10: #{tpu_custom_call.1} parent=1 // pred_check
      _
    $region11: #{tpu_custom_call.1} parent=1 // pred_check_branch
      %15 = sbr.rel (0) target = $region13
    $region12: #{tpu_custom_call.1} parent=1 // pred_region
      %s17 = ssub.s32 16, 16
      %18 = vsyncadd [#allocation4], %s17
      %s20 = sshll.u32 %s2, 4
      %s21 = int_to_ptr.vmem [resolvable:$true] %s20
      %23 = dma.vmem_to_smem %s21, 16, [#allocation2], [#allocation4]
    $region13: #{tpu_custom_call.1} parent=1 // pred_fallthru
      _
    // Predicated region
    $region14: #{tpu_custom_call.1} parent=1 // pred_check
      _
    $region15: #{tpu_custom_call.1} parent=1 // pred_check_branch
      %25 = sbr.rel (0) target = $region17
    $region16: #{tpu_custom_call.1} parent=1 // pred_region
      %26 = dma.done [#allocation4], 16
    $region17: #{tpu_custom_call.1} parent=1 // pred_fallthru
      _
    %27 = sfence
    %v28 = vld [vmem:[%s0] sm:$0xff]
    %v29 = vld [vmem:[%s0 + $0x8] sm:$0xff]
    %v30 = vld [vmem:[%s0 + $0x10] sm:$0xff]
    %v31 = vld [vmem:[%s0 + $0x18] sm:$0xff]
    %v32 = vld [vmem:[%s0 + $0x20] sm:$0xff]
    %v33 = vld [vmem:[%s0 + $0x28] sm:$0xff]
    %v34 = vld [vmem:[%s0 + $0x30] sm:$0xff]
    %v35 = vld [vmem:[%s0 + $0x38] sm:$0xff]
    %v36 = vld [vmem:[%s1] sm:$0xff]
    %v37 = vld [vmem:[%s1 + $0x8] sm:$0xff]
    %v38 = vld [vmem:[%s1 + $0x10] sm:$0xff]
    %v39 = vld [vmem:[%s1 + $0x18] sm:$0xff]
    %v40 = vld [vmem:[%s1 + $0x20] sm:$0xff]
    %v41 = vld [vmem:[%s1 + $0x28] sm:$0xff]
    %v42 = vld [vmem:[%s1 + $0x30] sm:$0xff]
    %v43 = vld [vmem:[%s1 + $0x38] sm:$0xff]
    %v44 = vld [vmem:[%s1 + $0x40] sm:$0xff]
    %v45 = vld [vmem:[%s1 + $0x48] sm:$0xff]
    %v46 = vld [vmem:[%s1 + $0x50] sm:$0xff]
    %v47 = vld [vmem:[%s1 + $0x58] sm:$0xff]
    %v48 = vld [vmem:[%s1 + $0x60] sm:$0xff]
    %v49 = vld [vmem:[%s1 + $0x68] sm:$0xff]
    %v50 = vld [vmem:[%s1 + $0x70] sm:$0xff]
    %v51 = vld [vmem:[%s1 + $0x78] sm:$0xff]
    %v52 = vld [vmem:[%s1 + $0x80] sm:$0xff]
    %v53 = vld [vmem:[%s1 + $0x88] sm:$0xff]
    %v54 = vld [vmem:[%s1 + $0x90] sm:$0xff]
    %v55 = vld [vmem:[%s1 + $0x98] sm:$0xff]
    %v56 = vld [vmem:[%s1 + $0xa0] sm:$0xff]
    %v57 = vld [vmem:[%s1 + $0xa8] sm:$0xff]
    %v58 = vld [vmem:[%s1 + $0xb0] sm:$0xff]
    %v59 = vld [vmem:[%s1 + $0xb8] sm:$0xff]
    %v60 = vld [vmem:[%s1 + $0xc0] sm:$0xff]
    %v61 = vld [vmem:[%s1 + $0xc8] sm:$0xff]
    %v62 = vld [vmem:[%s1 + $0xd0] sm:$0xff]
    %v63 = vld [vmem:[%s1 + $0xd8] sm:$0xff]
    %v64 = vld [vmem:[%s1 + $0xe0] sm:$0xff]
    %v65 = vld [vmem:[%s1 + $0xe8] sm:$0xff]
    %v66 = vld [vmem:[%s1 + $0xf0] sm:$0xff]
    %v67 = vld [vmem:[%s1 + $0xf8] sm:$0xff]
    %v68 = vld [vmem:[%s1 + $0x100] sm:$0xff]
    %v69 = vld [vmem:[%s1 + $0x108] sm:$0xff]
    %v70 = vld [vmem:[%s1 + $0x110] sm:$0xff]
    %v71 = vld [vmem:[%s1 + $0x118] sm:$0xff]
    %v72 = vld [vmem:[%s1 + $0x120] sm:$0xff]
    %v73 = vld [vmem:[%s1 + $0x128] sm:$0xff]
    %v74 = vld [vmem:[%s1 + $0x130] sm:$0xff]
    %v75 = vld [vmem:[%s1 + $0x138] sm:$0xff]
    %v76 = vld [vmem:[%s1 + $0x140] sm:$0xff]
    %v77 = vld [vmem:[%s1 + $0x148] sm:$0xff]
    %v78 = vld [vmem:[%s1 + $0x150] sm:$0xff]
    %v79 = vld [vmem:[%s1 + $0x158] sm:$0xff]
    %v80 = vld [vmem:[%s1 + $0x160] sm:$0xff]
    %v81 = vld [vmem:[%s1 + $0x168] sm:$0xff]
    %v82 = vld [vmem:[%s1 + $0x170] sm:$0xff]
    %v83 = vld [vmem:[%s1 + $0x178] sm:$0xff]
    %v84 = vld [vmem:[%s1 + $0x180] sm:$0xff]
    %v85 = vld [vmem:[%s1 + $0x188] sm:$0xff]
    %v86 = vld [vmem:[%s1 + $0x190] sm:$0xff]
    %v87 = vld [vmem:[%s1 + $0x198] sm:$0xff]
    %v88 = vld [vmem:[%s1 + $0x1a0] sm:$0xff]
    %v89 = vld [vmem:[%s1 + $0x1a8] sm:$0xff]
    %v90 = vld [vmem:[%s1 + $0x1b0] sm:$0xff]
    %v91 = vld [vmem:[%s1 + $0x1b8] sm:$0xff]
    %v92 = vld [vmem:[%s1 + $0x1c0] sm:$0xff]
    %v93 = vld [vmem:[%s1 + $0x1c8] sm:$0xff]
    %v94 = vld [vmem:[%s1 + $0x1d0] sm:$0xff]
    %v95 = vld [vmem:[%s1 + $0x1d8] sm:$0xff]
    %v96 = vld [vmem:[%s1 + $0x1e0] sm:$0xff]
    %v97 = vld [vmem:[%s1 + $0x1e8] sm:$0xff]
    %v98 = vld [vmem:[%s1 + $0x1f0] sm:$0xff]
    %v99 = vld [vmem:[%s1 + $0x1f8] sm:$0xff]
    %v100 = vld [vmem:[%s1 + $0x200] sm:$0xff]
    %v101 = vld [vmem:[%s1 + $0x208] sm:$0xff]
    %v102 = vld [vmem:[%s1 + $0x210] sm:$0xff]
    %v103 = vld [vmem:[%s1 + $0x218] sm:$0xff]
    %v104 = vld [vmem:[%s1 + $0x220] sm:$0xff]
    %v105 = vld [vmem:[%s1 + $0x228] sm:$0xff]
    %v106 = vld [vmem:[%s1 + $0x230] sm:$0xff]
    %v107 = vld [vmem:[%s1 + $0x238] sm:$0xff]
    %v108 = vld [vmem:[%s1 + $0x240] sm:$0xff]
    %v109 = vld [vmem:[%s1 + $0x248] sm:$0xff]
    %v110 = vld [vmem:[%s1 + $0x250] sm:$0xff]
    %v111 = vld [vmem:[%s1 + $0x258] sm:$0xff]
    %v112 = vld [vmem:[%s1 + $0x260] sm:$0xff]
    %v113 = vld [vmem:[%s1 + $0x268] sm:$0xff]
    %v114 = vld [vmem:[%s1 + $0x270] sm:$0xff]
    %v115 = vld [vmem:[%s1 + $0x278] sm:$0xff]
    %v116 = vld [vmem:[%s1 + $0x280] sm:$0xff]
    %v117 = vld [vmem:[%s1 + $0x288] sm:$0xff]
    %v118 = vld [vmem:[%s1 + $0x290] sm:$0xff]
    %v119 = vld [vmem:[%s1 + $0x298] sm:$0xff]
    %v120 = vld [vmem:[%s1 + $0x2a0] sm:$0xff]
    %v121 = vld [vmem:[%s1 + $0x2a8] sm:$0xff]
    %v122 = vld [vmem:[%s1 + $0x2b0] sm:$0xff]
    %v123 = vld [vmem:[%s1 + $0x2b8] sm:$0xff]
    %v124 = vld [vmem:[%s1 + $0x2c0] sm:$0xff]
    %v125 = vld [vmem:[%s1 + $0x2c8] sm:$0xff]
    %v126 = vld [vmem:[%s1 + $0x2d0] sm:$0xff]
    %v127 = vld [vmem:[%s1 + $0x2d8] sm:$0xff]
    %v128 = vld [vmem:[%s1 + $0x2e0] sm:$0xff]
    %v129 = vld [vmem:[%s1 + $0x2e8] sm:$0xff]
    %v130 = vld [vmem:[%s1 + $0x2f0] sm:$0xff]
    %v131 = vld [vmem:[%s1 + $0x2f8] sm:$0xff]
    %v132 = vld [vmem:[%s1 + $0x300] sm:$0xff]
    %v133 = vld [vmem:[%s1 + $0x308] sm:$0xff]
    %v134 = vld [vmem:[%s1 + $0x310] sm:$0xff]
    %v135 = vld [vmem:[%s1 + $0x318] sm:$0xff]
    %v136 = vld [vmem:[%s1 + $0x320] sm:$0xff]
    %v137 = vld [vmem:[%s1 + $0x328] sm:$0xff]
    %v138 = vld [vmem:[%s1 + $0x330] sm:$0xff]
    %v139 = vld [vmem:[%s1 + $0x338] sm:$0xff]
    %v140 = vld [vmem:[%s1 + $0x340] sm:$0xff]
    %v141 = vld [vmem:[%s1 + $0x348] sm:$0xff]
    %v142 = vld [vmem:[%s1 + $0x350] sm:$0xff]
    %v143 = vld [vmem:[%s1 + $0x358] sm:$0xff]
    %v144 = vld [vmem:[%s1 + $0x360] sm:$0xff]
    %v145 = vld [vmem:[%s1 + $0x368] sm:$0xff]
    %v146 = vld [vmem:[%s1 + $0x370] sm:$0xff]
    %v147 = vld [vmem:[%s1 + $0x378] sm:$0xff]
    %v148 = vld [vmem:[%s1 + $0x380] sm:$0xff]
    %v149 = vld [vmem:[%s1 + $0x388] sm:$0xff]
    %v150 = vld [vmem:[%s1 + $0x390] sm:$0xff]
    %v151 = vld [vmem:[%s1 + $0x398] sm:$0xff]
    %v152 = vld [vmem:[%s1 + $0x3a0] sm:$0xff]
    %v153 = vld [vmem:[%s1 + $0x3a8] sm:$0xff]
    %v154 = vld [vmem:[%s1 + $0x3b0] sm:$0xff]
    %v155 = vld [vmem:[%s1 + $0x3b8] sm:$0xff]
    %v156 = vld [vmem:[%s1 + $0x3c0] sm:$0xff]
    %v157 = vld [vmem:[%s1 + $0x3c8] sm:$0xff]
    %v158 = vld [vmem:[%s1 + $0x3d0] sm:$0xff]
    %v159 = vld [vmem:[%s1 + $0x3d8] sm:$0xff]
    %v160 = vld [vmem:[%s1 + $0x3e0] sm:$0xff]
    %v161 = vld [vmem:[%s1 + $0x3e8] sm:$0xff]
    %v162 = vld [vmem:[%s1 + $0x3f0] sm:$0xff]
    %v163 = vld [vmem:[%s1 + $0x3f8] sm:$0xff]
    %v164 = vlaneseq
    %v165 = vand.u32 %v164, 127
    %vm166 = vcmp.eq.s32.totalorder %v165, 0
    %s167 = sld [smem:[#allocation2]]
    %s168 = sld [smem:[#allocation2 + $0x1]]
    %v169 = vstv %s167
    %v170 = vstv %s168
    %v171 = vsel %vm166, %v169, %v170
    %v180 = vcombine.low %v28, %v30
    %v181 = vcombine.high %v28, %v30
    %v182 = vcombine.low %v32, %v34
    %v183 = vcombine.high %v32, %v34
    %v185 = vunpack.c.l.s4 1983009808
    %v186 = vunpack.c.0.s8 %v185
    %v187 = vlaneseq
    %v188 = vshrl.u32 %v187, 7
    %v189 = vsub.s32 %v186, %v188
    %v190 = vrot.slane %v180, %v189
    %v192 = vunpack.c.l.s4 1983009808
    %v193 = vunpack.c.0.s8 %v192
    %v194 = vlaneseq
    %v195 = vshrl.u32 %v194, 7
    %v196 = vsub.s32 %v193, %v195
    %v197 = vrot.slane %v181, %v196
    %v199 = vunpack.c.l.s4 1983009808
    %v200 = vunpack.c.0.s8 %v199
    %v201 = vlaneseq
    %v202 = vshrl.u32 %v201, 7
    %v203 = vsub.s32 %v200, %v202
    %v204 = vrot.slane %v182, %v203
    %v206 = vunpack.c.l.s4 1983009808
    %v207 = vunpack.c.0.s8 %v206
    %v208 = vlaneseq
    %v209 = vshrl.u32 %v208, 7
    %v210 = vsub.s32 %v207, %v209
    %v211 = vrot.slane %v183, %v210
    %v212 = vcombine.low %v190, %v204
    %v213 = vcombine.high %v190, %v204
    %v214 = vcombine.low %v197, %v211
    %v215 = vcombine.high %v197, %v211
    %v216 = vcombine.low %v29, %v31
    %v217 = vcombine.high %v29, %v31
    %v218 = vcombine.low %v33, %v35
    %v219 = vcombine.high %v33, %v35
    %v221 = vunpack.c.l.s4 1983009808
    %v222 = vunpack.c.0.s8 %v221
    %v223 = vlaneseq
    %v224 = vshrl.u32 %v223, 7
    %v225 = vsub.s32 %v222, %v224
    %v226 = vrot.slane %v216, %v225
    %v228 = vunpack.c.l.s4 1983009808
    %v229 = vunpack.c.0.s8 %v228
    %v230 = vlaneseq
    %v231 = vshrl.u32 %v230, 7
    %v232 = vsub.s32 %v229, %v231
    %v233 = vrot.slane %v217, %v232
    %v235 = vunpack.c.l.s4 1983009808
    %v236 = vunpack.c.0.s8 %v235
    %v237 = vlaneseq
    %v238 = vshrl.u32 %v237, 7
    %v239 = vsub.s32 %v236, %v238
    %v240 = vrot.slane %v218, %v239
    %v242 = vunpack.c.l.s4 1983009808
    %v243 = vunpack.c.0.s8 %v242
    %v244 = vlaneseq
    %v245 = vshrl.u32 %v244, 7
    %v246 = vsub.s32 %v243, %v245
    %v247 = vrot.slane %v219, %v246
    %v248 = vcombine.low %v226, %v240
    %v249 = vcombine.high %v226, %v240
    %v250 = vcombine.low %v233, %v247
    %v251 = vcombine.high %v233, %v247
    %260 = vmatprep.subr.mxu0 0.0
    %261 = vmatpush1.msra.mxu0 %v36
    %262 = vmatprep.subr.mxu0 0.0
    %263 = vmatpush1.msra.mxu0 %v37
    %264 = vmatprep.subr.mxu0 0.0
    %265 = vmatpush1.msra.mxu0 %v38
    %266 = vmatprep.subr.mxu0 0.0
    %267 = vmatpush1.msra.mxu0 %v39
    %268 = vmatprep.subr.mxu0 0.0
    %269 = vmatpush1.msra.mxu0 %v40
    %270 = vmatprep.subr.mxu0 0.0
    %271 = vmatpush1.msra.mxu0 %v41
    %272 = vmatprep.subr.mxu0 0.0
    %273 = vmatpush1.msra.mxu0 %v42
    %274 = vmatprep.subr.mxu0 0.0
    %275 = vmatpush1.msra.mxu0 %v43
    %276 = vmatprep.subr.mxu0 0.0
    %277 = vmatpush1.msra.mxu0 %v44
    %278 = vmatprep.subr.mxu0 0.0
    %279 = vmatpush1.msra.mxu0 %v45
    %280 = vmatprep.subr.mxu0 0.0
    %281 = vmatpush1.msra.mxu0 %v46
    %282 = vmatprep.subr.mxu0 0.0
    %283 = vmatpush1.msra.mxu0 %v47
    %284 = vmatprep.subr.mxu0 0.0
    %285 = vmatpush1.msra.mxu0 %v48
    %286 = vmatprep.subr.mxu0 0.0
    %287 = vmatpush1.msra.mxu0 %v49
    %288 = vmatprep.subr.mxu0 0.0
    %289 = vmatpush1.msra.mxu0 %v50
    %290 = vmatprep.subr.mxu0 0.0
    %291 = vmatpush1.msra.mxu0 %v51
    %292 = vmatprep.subr.mxu0 0.0
    %293 = vmatpush1.msra.mxu0 %v52
    %294 = vmatprep.subr.mxu0 0.0
    %295 = vmatpush1.msra.mxu0 %v53
    %296 = vmatprep.subr.mxu0 0.0
    %297 = vmatpush1.msra.mxu0 %v54
    %298 = vmatprep.subr.mxu0 0.0
    %299 = vmatpush1.msra.mxu0 %v55
    %300 = vmatprep.subr.mxu0 0.0
    %301 = vmatpush1.msra.mxu0 %v56
    %302 = vmatprep.subr.mxu0 0.0
    %303 = vmatpush1.msra.mxu0 %v57
    %304 = vmatprep.subr.mxu0 0.0
    %305 = vmatpush1.msra.mxu0 %v58
    %306 = vmatprep.subr.mxu0 0.0
    %307 = vmatpush1.msra.mxu0 %v59
    %308 = vmatprep.subr.mxu0 0.0
    %309 = vmatpush1.msra.mxu0 %v60
    %310 = vmatprep.subr.mxu0 0.0
    %311 = vmatpush1.msra.mxu0 %v61
    %312 = vmatprep.subr.mxu0 0.0
    %313 = vmatpush1.msra.mxu0 %v62
    %314 = vmatprep.subr.mxu0 0.0
    %315 = vmatpush1.msra.mxu0 %v63
    %316 = vmatprep.subr.mxu0 0.0
    %317 = vmatpush1.msra.mxu0 %v64
    %318 = vmatprep.subr.mxu0 0.0
    %319 = vmatpush1.msra.mxu0 %v65
    %320 = vmatprep.subr.mxu0 0.0
    %321 = vmatpush1.msra.mxu0 %v66
    %322 = vmatprep.subr.mxu0 0.0
    %323 = vmatpush1.msra.mxu0 %v67
    %324 = vmatprep.mubr.f32.mxu0 %v213
    %325 = vmatmul.mubr.f32.gmra.mrb[0].mxu0 %v212
    %v326 = vpop.f32.mrb[0].mxu0
    %v327 = vadd.f32 %v171, %v326
    %v328 = vpop.f32.mrb[0].mxu0
    %329 = vdwg.mxu0
    %330 = vmatprep.subr.mxu0 0.0
    %331 = vmatpush1.msra.mxu0 %v68
    %332 = vmatprep.subr.mxu0 0.0
    %333 = vmatpush1.msra.mxu0 %v69
    %334 = vmatprep.subr.mxu0 0.0
    %335 = vmatpush1.msra.mxu0 %v70
    %336 = vmatprep.subr.mxu0 0.0
    %337 = vmatpush1.msra.mxu0 %v71
    %338 = vmatprep.subr.mxu0 0.0
    %339 = vmatpush1.msra.mxu0 %v72
    %340 = vmatprep.subr.mxu0 0.0
    %341 = vmatpush1.msra.mxu0 %v73
    %342 = vmatprep.subr.mxu0 0.0
    %343 = vmatpush1.msra.mxu0 %v74
    %344 = vmatprep.subr.mxu0 0.0
    %345 = vmatpush1.msra.mxu0 %v75
    %346 = vmatprep.subr.mxu0 0.0
    %347 = vmatpush1.msra.mxu0 %v76
    %348 = vmatprep.subr.mxu0 0.0
    %349 = vmatpush1.msra.mxu0 %v77
    %350 = vmatprep.subr.mxu0 0.0
    %351 = vmatpush1.msra.mxu0 %v78
    %352 = vmatprep.subr.mxu0 0.0
    %353 = vmatpush1.msra.mxu0 %v79
    %354 = vmatprep.subr.mxu0 0.0
    %355 = vmatpush1.msra.mxu0 %v80
    %356 = vmatprep.subr.mxu0 0.0
    %357 = vmatpush1.msra.mxu0 %v81
    %358 = vmatprep.subr.mxu0 0.0
    %359 = vmatpush1.msra.mxu0 %v82
    %360 = vmatprep.subr.mxu0 0.0
    %361 = vmatpush1.msra.mxu0 %v83
    %362 = vmatprep.subr.mxu0 0.0
    %363 = vmatpush1.msra.mxu0 %v84
    %364 = vmatprep.subr.mxu0 0.0
    %365 = vmatpush1.msra.mxu0 %v85
    %366 = vmatprep.subr.mxu0 0.0
    %367 = vmatpush1.msra.mxu0 %v86
    %368 = vmatprep.subr.mxu0 0.0
    %369 = vmatpush1.msra.mxu0 %v87
    %370 = vmatprep.subr.mxu0 0.0
    %371 = vmatpush1.msra.mxu0 %v88
    %372 = vmatprep.subr.mxu0 0.0
    %373 = vmatpush1.msra.mxu0 %v89
    %374 = vmatprep.subr.mxu0 0.0
    %375 = vmatpush1.msra.mxu0 %v90
    %376 = vmatprep.subr.mxu0 0.0
    %377 = vmatpush1.msra.mxu0 %v91
    %378 = vmatprep.subr.mxu0 0.0
    %379 = vmatpush1.msra.mxu0 %v92
    %380 = vmatprep.subr.mxu0 0.0
    %381 = vmatpush1.msra.mxu0 %v93
    %382 = vmatprep.subr.mxu0 0.0
    %383 = vmatpush1.msra.mxu0 %v94
    %384 = vmatprep.subr.mxu0 0.0
    %385 = vmatpush1.msra.mxu0 %v95
    %386 = vmatprep.subr.mxu0 0.0
    %387 = vmatpush1.msra.mxu0 %v96
    %388 = vmatprep.subr.mxu0 0.0
    %389 = vmatpush1.msra.mxu0 %v97
    %390 = vmatprep.subr.mxu0 0.0
    %391 = vmatpush1.msra.mxu0 %v98
    %392 = vmatprep.subr.mxu0 0.0
    %393 = vmatpush1.msra.mxu0 %v99
    %394 = vmatprep.mubr.f32.mxu0 %v215
    %395 = vmatmul.mubr.f32.gmra.mrb[0].mxu0 %v214
    %v396 = vpop.f32.mrb[0].mxu0
    %v397 = vadd.f32 %v327, %v396
    %v398 = vpop.f32.mrb[0].mxu0
    %399 = vdwg.mxu0
    %400 = vmatprep.subr.mxu0 0.0
    %401 = vmatpush1.msra.mxu0 %v100
    %402 = vmatprep.subr.mxu0 0.0
    %403 = vmatpush1.msra.mxu0 %v101
    %404 = vmatprep.subr.mxu0 0.0
    %405 = vmatpush1.msra.mxu0 %v102
    %406 = vmatprep.subr.mxu0 0.0
    %407 = vmatpush1.msra.mxu0 %v103
    %408 = vmatprep.subr.mxu0 0.0
    %409 = vmatpush1.msra.mxu0 %v104
    %410 = vmatprep.subr.mxu0 0.0
    %411 = vmatpush1.msra.mxu0 %v105
    %412 = vmatprep.subr.mxu0 0.0
    %413 = vmatpush1.msra.mxu0 %v106
    %414 = vmatprep.subr.mxu0 0.0
    %415 = vmatpush1.msra.mxu0 %v107
    %416 = vmatprep.subr.mxu0 0.0
    %417 = vmatpush1.msra.mxu0 %v108
    %418 = vmatprep.subr.mxu0 0.0
    %419 = vmatpush1.msra.mxu0 %v109
    %420 = vmatprep.subr.mxu0 0.0
    %421 = vmatpush1.msra.mxu0 %v110
    %422 = vmatprep.subr.mxu0 0.0
    %423 = vmatpush1.msra.mxu0 %v111
    %424 = vmatprep.subr.mxu0 0.0
    %425 = vmatpush1.msra.mxu0 %v112
    %426 = vmatprep.subr.mxu0 0.0
    %427 = vmatpush1.msra.mxu0 %v113
    %428 = vmatprep.subr.mxu0 0.0
    %429 = vmatpush1.msra.mxu0 %v114
    %430 = vmatprep.subr.mxu0 0.0
    %431 = vmatpush1.msra.mxu0 %v115
    %432 = vmatprep.subr.mxu0 0.0
    %433 = vmatpush1.msra.mxu0 %v116
    %434 = vmatprep.subr.mxu0 0.0
    %435 = vmatpush1.msra.mxu0 %v117
    %436 = vmatprep.subr.mxu0 0.0
    %437 = vmatpush1.msra.mxu0 %v118
    %438 = vmatprep.subr.mxu0 0.0
    %439 = vmatpush1.msra.mxu0 %v119
    %440 = vmatprep.subr.mxu0 0.0
    %441 = vmatpush1.msra.mxu0 %v120
    %442 = vmatprep.subr.mxu0 0.0
    %443 = vmatpush1.msra.mxu0 %v121
    %444 = vmatprep.subr.mxu0 0.0
    %445 = vmatpush1.msra.mxu0 %v122
    %446 = vmatprep.subr.mxu0 0.0
    %447 = vmatpush1.msra.mxu0 %v123
    %448 = vmatprep.subr.mxu0 0.0
    %449 = vmatpush1.msra.mxu0 %v124
    %450 = vmatprep.subr.mxu0 0.0
    %451 = vmatpush1.msra.mxu0 %v125
    %452 = vmatprep.subr.mxu0 0.0
    %453 = vmatpush1.msra.mxu0 %v126
    %454 = vmatprep.subr.mxu0 0.0
    %455 = vmatpush1.msra.mxu0 %v127
    %456 = vmatprep.subr.mxu0 0.0
    %457 = vmatpush1.msra.mxu0 %v128
    %458 = vmatprep.subr.mxu0 0.0
    %459 = vmatpush1.msra.mxu0 %v129
    %460 = vmatprep.subr.mxu0 0.0
    %461 = vmatpush1.msra.mxu0 %v130
    %462 = vmatprep.subr.mxu0 0.0
    %463 = vmatpush1.msra.mxu0 %v131
    %464 = vmatprep.mubr.f32.mxu0 %v249
    %465 = vmatmul.mubr.f32.gmra.mrb[0].mxu0 %v248
    %v466 = vpop.f32.mrb[0].mxu0
    %v467 = vadd.f32 %v397, %v466
    %v468 = vpop.f32.mrb[0].mxu0
    %469 = vdwg.mxu0
    %470 = vmatprep.subr.mxu0 0.0
    %471 = vmatpush1.msra.mxu0 %v132
    %472 = vmatprep.subr.mxu0 0.0
    %473 = vmatpush1.msra.mxu0 %v133
    %474 = vmatprep.subr.mxu0 0.0
    %475 = vmatpush1.msra.mxu0 %v134
    %476 = vmatprep.subr.mxu0 0.0
    %477 = vmatpush1.msra.mxu0 %v135
    %478 = vmatprep.subr.mxu0 0.0
    %479 = vmatpush1.msra.mxu0 %v136
    %480 = vmatprep.subr.mxu0 0.0
    %481 = vmatpush1.msra.mxu0 %v137
    %482 = vmatprep.subr.mxu0 0.0
    %483 = vmatpush1.msra.mxu0 %v138
    %484 = vmatprep.subr.mxu0 0.0
    %485 = vmatpush1.msra.mxu0 %v139
    %486 = vmatprep.subr.mxu0 0.0
    %487 = vmatpush1.msra.mxu0 %v140
    %488 = vmatprep.subr.mxu0 0.0
    %489 = vmatpush1.msra.mxu0 %v141
    %490 = vmatprep.subr.mxu0 0.0
    %491 = vmatpush1.msra.mxu0 %v142
    %492 = vmatprep.subr.mxu0 0.0
    %493 = vmatpush1.msra.mxu0 %v143
    %494 = vmatprep.subr.mxu0 0.0
    %495 = vmatpush1.msra.mxu0 %v144
    %496 = vmatprep.subr.mxu0 0.0
    %497 = vmatpush1.msra.mxu0 %v145
    %498 = vmatprep.subr.mxu0 0.0
    %499 = vmatpush1.msra.mxu0 %v146
    %500 = vmatprep.subr.mxu0 0.0
    %501 = vmatpush1.msra.mxu0 %v147
    %502 = vmatprep.subr.mxu0 0.0
    %503 = vmatpush1.msra.mxu0 %v148
    %504 = vmatprep.subr.mxu0 0.0
    %505 = vmatpush1.msra.mxu0 %v149
    %506 = vmatprep.subr.mxu0 0.0
    %507 = vmatpush1.msra.mxu0 %v150
    %508 = vmatprep.subr.mxu0 0.0
    %509 = vmatpush1.msra.mxu0 %v151
    %510 = vmatprep.subr.mxu0 0.0
    %511 = vmatpush1.msra.mxu0 %v152
    %512 = vmatprep.subr.mxu0 0.0
    %513 = vmatpush1.msra.mxu0 %v153
    %514 = vmatprep.subr.mxu0 0.0
    %515 = vmatpush1.msra.mxu0 %v154
    %516 = vmatprep.subr.mxu0 0.0
    %517 = vmatpush1.msra.mxu0 %v155
    %518 = vmatprep.subr.mxu0 0.0
    %519 = vmatpush1.msra.mxu0 %v156
    %520 = vmatprep.subr.mxu0 0.0
    %521 = vmatpush1.msra.mxu0 %v157
    %522 = vmatprep.subr.mxu0 0.0
    %523 = vmatpush1.msra.mxu0 %v158
    %524 = vmatprep.subr.mxu0 0.0
    %525 = vmatpush1.msra.mxu0 %v159
    %526 = vmatprep.subr.mxu0 0.0
    %527 = vmatpush1.msra.mxu0 %v160
    %528 = vmatprep.subr.mxu0 0.0
    %529 = vmatpush1.msra.mxu0 %v161
    %530 = vmatprep.subr.mxu0 0.0
    %531 = vmatpush1.msra.mxu0 %v162
    %532 = vmatprep.subr.mxu0 0.0
    %533 = vmatpush1.msra.mxu0 %v163
    %534 = vmatprep.mubr.f32.mxu0 %v251
    %535 = vmatmul.mubr.f32.gmra.mrb[0].mxu0 %v250
    %v536 = vpop.f32.mrb[0].mxu0
    %v537 = vadd.f32 %v467, %v536
    %v538 = vpop.f32.mrb[0].mxu0
    %539 = vdwg.mxu0
    %vm540 = vcmask 15360
    %541 = vst.msk [vmem:[#allocation5] sm:$0xff] %vm540, %v537
    // Predicated region
    $region18: #{tpu_custom_call.1} parent=1 // pred_check
      _
    $region19: #{tpu_custom_call.1} parent=1 // pred_check_branch
      %543 = sbr.rel (0) target = $region21
    $region20: #{tpu_custom_call.1} parent=1 // pred_region
      %s545 = ssub.s32 128, 32
      %546 = vsyncadd [#allocation3], %s545
      %s547 = sshll.u32 [#allocation5], 4
      %s548 = int_to_ptr.vmem [resolvable:$true] %s547
      %553 = dma.vmem_to_hbm [thread:$0]  %s548, 32, %s3, [#allocation3], 32, 32, 2
    $region21: #{tpu_custom_call.1} parent=1 // pred_fallthru
      _
    // Predicated region
    $region22: #{tpu_custom_call.1} parent=1 // pred_check
      _
    $region23: #{tpu_custom_call.1} parent=1 // pred_check_branch
      %555 = sbr.rel (0) target = $region25
    $region24: #{tpu_custom_call.1} parent=1 // pred_region
      %556 = dma.done [#allocation3], 128
    $region25: #{tpu_custom_call.1} parent=1 // pred_fallthru
      _
    %557 = vsyncpa [#allocation3], 1
    %558 = vsyncpa [#allocation4], 1

</llo_original>
